<compile_context>
chip_gen: v6e
topology: v6e:2x2x1
jax: 0.10.0
libtpu: 0.0.40
codegen_flags: <defaults>
</compile_context>

<pallas_src>
import jax
import jax.numpy as jnp
from jax import lax
from jax.experimental import pallas as pl
from jax.experimental.pallas import tpu as pltpu


def _round_up(n, m):
    return ((n + m - 1) // m) * m


def _tensorcores_per_chip() -> int:
    """Best-effort TensorCores-per-chip (v7x: 2, v5e/v6e: 1)."""
    try:
        kind = jax.devices()[0].device_kind.lower()
    except Exception:
        return 1
    return 2 if "v7" in kind else 1


# ----------------------------------------------------------------------------
# Fused 3x3 "same" convolution kernel on flattened, pre-padded planes.
# ----------------------------------------------------------------------------
def _conv3x3_same_flat(x_fold, wm, b_col, *, W, bpg, blk, n_cols, n_tot):
    """x_fold: (G, Cin, n_tot) f32 — per grid step, `bpg` batch elements folded
    along lanes; each batch occupies a `blk`-wide block whose columns are
    [0:L) zeros | flattened (H+2, W+2) zero-padded plane | slack zeros.

    wm:    (Cout, 9*Cin) f32, column = (kh*3+kw)*Cin + ci
    b_col: (Cout, 1) f32
    returns (G, Cout, n_cols) f32 — conv over padded-plane positions; the
    wrapper drops border/slack columns.
    """
    G, Cin, _ = x_fold.shape
    Cout, KC = wm.shape                   # KC = 9 * Cin
    Wp = W + 2
    L = Wp + 1                            # left slack == largest negative tap shift

    def kernel(x_ref, w_ref, b_ref, o_ref, patch_ref):
        xv = x_ref[0]                                       # (Cin, n_tot)
        # im2col via static lane shifts of the flattened padded plane.
        t = 0
        for kh in range(3):
            for kw in range(3):
                off = L + (kh - 1) * Wp + (kw - 1)          # in [0, 2*L]
                patch_ref[t * Cin:(t + 1) * Cin, :] = xv[:, off:off + n_cols]
                t += 1
        # Single MXU push, K = 9*Cin, f32 accumulation.
        acc = jnp.dot(w_ref[...], patch_ref[...],
                      preferred_element_type=jnp.float32)
        # Lane-dense (Cout, n_cols) store — already NCHW ordered.
        o_ref[0] = (acc + b_ref[...]).astype(o_ref.dtype)

    return pl.pallas_call(
        kernel,
        out_shape=jax.ShapeDtypeStruct((G, Cout, n_cols), jnp.float32),
        grid_spec=pltpu.PrefetchScalarGridSpec(
            num_scalar_prefetch=0,
            grid=(G,),
            in_specs=[
                pl.BlockSpec((1, Cin, n_tot), lambda g: (g, 0, 0)),
                pl.BlockSpec((Cout, KC), lambda g: (0, 0)),
                pl.BlockSpec((Cout, 1), lambda g: (0, 0)),
            ],
            out_specs=pl.BlockSpec((1, Cout, n_cols), lambda g: (g, 0, 0)),
            scratch_shapes=[pltpu.VMEM((KC, n_cols), jnp.float32)],   # im2col patch
        ),
        compiler_params=pltpu.CompilerParams(
            dimension_semantics=("parallel",)),
    )(x_fold, wm, b_col)


# ----------------------------------------------------------------------------
# Inconv forward: NCHW in / NCHW out (PyTorch convention)
# ----------------------------------------------------------------------------
def inconv_forward(params, x_nchw, *, batch_per_step=None):
    w = params["w"]                       # (Cout, Cin, 3, 3)  PyTorch layout
    b = params["b"]                       # (Cout,)
    B, Cin, H, W = x_nchw.shape
    Cout = w.shape[0]
    Hp, Wp = H + 2, W + 2
    P = Hp * Wp                           # flattened padded-plane length
    L = Wp + 1                            # left slack (largest negative tap shift)
    blk = _round_up(L + P, 128)           # per-batch lane block (always lane-dense)
    tail = _round_up(2 * (Wp + 1), 128)   # right slack for the last batch's taps

    # Grid sized to core count: fold batch on single-TC chips, keep a parallel
    # batch axis on v7x megacore.
    if batch_per_step is None:
        batch_per_step = 1 if _tensorcores_per_chip() > 1 else B
    bpg = batch_per_step
    if bpg < 1 or B % bpg != 0:
        bpg = 1
    G = B // bpg
    n_cols = bpg * blk
    n_tot = n_cols + tail

    # ---- one-time layout prep in XLA (pad/reshape, ~KBs, fuses) ------------
    xf = x_nchw.astype(jnp.float32)
    x_pad = jnp.pad(xf, ((0, 0), (0, 0), (1, 1), (1, 1)))        # zero halo
    x_flat = x_pad.reshape(B, Cin, P)                            # row-major plane
    x_blk = jnp.pad(x_flat, ((0, 0), (0, 0), (L, blk - L - P)))  # (B, Cin, blk)
    x_fold = (x_blk.reshape(G, bpg, Cin, blk)
                    .transpose(0, 2, 1, 3)
                    .reshape(G, Cin, n_cols))
    x_fold = jnp.pad(x_fold, ((0, 0), (0, 0), (0, tail)))        # (G, Cin, n_tot)

    # Weights -> (Cout, 9*Cin), column = (kh*3+kw)*Cin + ci (matches patch rows).
    wm = jnp.transpose(w, (0, 2, 3, 1)).reshape(Cout, 9 * Cin).astype(jnp.float32)
    b_col = b.reshape(Cout, 1).astype(jnp.float32)

    out = _conv3x3_same_flat(x_fold, wm, b_col, W=W,
                             bpg=bpg, blk=blk, n_cols=n_cols, n_tot=n_tot)

    # Un-fold batches and drop padded-plane border / slack columns (tiny XLA ops).
    out = (out.reshape(G, Cout, bpg, blk)
              .transpose(0, 2, 1, 3)
              .reshape(B, Cout, blk)[:, :, :P]
              .reshape(B, Cout, Hp, Wp)[:, :, 1:-1, 1:-1])
    return out


# ----------------------------------------------------------------------------
# Pure-JAX reference (mirrors nn.Conv2d(in, out, kernel_size=3, padding=1))
# ----------------------------------------------------------------------------
def reference_forward(params, x_nchw):
    out = lax.conv_general_dilated(
        x_nchw, params["w"], window_strides=(1, 1), padding="SAME",
        dimension_numbers=("NCHW", "OIHW", "NCHW"))
    return out + params["b"].reshape(1, -1, 1, 1)


if __name__ == "__main__":
    key = jax.random.PRNGKey(0)
    B, Cin, Cout, H, W = 2, 4, 8, 16, 16
    k1, k2, k3 = jax.random.split(key, 3)

    params = dict(
        w=0.1 * jax.random.normal(k1, (Cout, Cin, 3, 3), jnp.float32),
        b=0.1 * jax.random.normal(k2, (Cout,), jnp.float32),
    )
    x = jax.random.normal(k3, (B, Cin, H, W), jnp.float32)

    ref = reference_forward(params, x)
    run = jax.jit(inconv_forward, static_argnames=("batch_per_step",))

    # Default: grid sized to the chip's TensorCore count.
    out = jax.block_until_ready(run(params, x))
    assert out.shape == (B, Cout, H, W), out.shape
    err = float(jnp.max(jnp.abs(out - ref)))
    assert err < 1e-3, f"max abs err {err}"

    # Exercise both grid layouts (batch folded into one step, and per-batch
    # parallel grid) so the kernel is validated for every chip generation.
    for bps in (B, 1):
        o = jax.block_until_ready(run(params, x, batch_per_step=bps))
        e = float(jnp.max(jnp.abs(o - ref)))
        assert o.shape == (B, Cout, H, W), o.shape
        assert e < 1e-3, f"batch_per_step={bps}: max abs err {e}"

    print("KERNEL_OK")
</pallas_src>

<mosaic_0001>
module attributes {stable_mosaic.version = 11 : i64} {
  func.func @kernel(%arg0: i32, %arg1: memref<1x4x896xf32, #tpu.memory_space<vmem>>, %arg2: memref<8x36xf32, #tpu.memory_space<vmem>>, %arg3: memref<8x1xf32, #tpu.memory_space<vmem>>, %arg4: memref<1x8x768xf32, #tpu.memory_space<vmem>>, %arg5: memref<36x768xf32, #tpu.memory_space<vmem>>) attributes {dimension_semantics = [#tpu.dimension_semantics<parallel>], iteration_bounds = array<i64: 1>, scalar_prefetch = 0 : i64, scratch_operands = 1 : i64, tpu.core_type = #tpu.core_type<tc>, window_params = [{transform_indices = @transform_0, window_bounds = array<i64: 1, 4, 896>}, {pipeline_mode = #tpu.pipeline_mode<synchronous>, transform_indices = @transform_1, window_bounds = array<i64: 8, 36>}, {pipeline_mode = #tpu.pipeline_mode<synchronous>, transform_indices = @transform_2, window_bounds = array<i64: 8, 1>}, {transform_indices = @transform_3, window_bounds = array<i64: 1, 8, 768>}]} {
    %c0 = arith.constant 0 : index
    %c0_0 = arith.constant 0 : index
    %c0_1 = arith.constant 0 : index
    %0 = vector.load %arg1[%c0, %c0_0, %c0_1] : memref<1x4x896xf32, #tpu.memory_space<vmem>>, vector<1x4x896xf32>
    %1 = vector.shape_cast %0 : vector<1x4x896xf32> to vector<4x896xf32>
    %2 = vector.extract_strided_slice %1 {offsets = [0, 0], sizes = [4, 768], strides = [1, 1]} : vector<4x896xf32> to vector<4x768xf32>
    %c0_2 = arith.constant 0 : index
    %c0_3 = arith.constant 0 : index
    %3 = vector.load %arg5[%c0_2, %c0_3] : memref<36x768xf32, #tpu.memory_space<vmem>>, vector<4x768xf32>
    tpu.vector_store %arg5[%c0_2, %c0_3], %2 {strides = array<i32>} : memref<36x768xf32, #tpu.memory_space<vmem>>, vector<4x768xf32>,
    %4 = vector.extract_strided_slice %1 {offsets = [0, 1], sizes = [4, 768], strides = [1, 1]} : vector<4x896xf32> to vector<4x768xf32>
    %c4 = arith.constant 4 : index
    %c0_4 = arith.constant 0 : index
    %5 = vector.load %arg5[%c4, %c0_4] : memref<36x768xf32, #tpu.memory_space<vmem>>, vector<4x768xf32>
    tpu.vector_store %arg5[%c4, %c0_4], %4 {strides = array<i32>} : memref<36x768xf32, #tpu.memory_space<vmem>>, vector<4x768xf32>,
    %6 = vector.extract_strided_slice %1 {offsets = [0, 2], sizes = [4, 768], strides = [1, 1]} : vector<4x896xf32> to vector<4x768xf32>
    %c8 = arith.constant 8 : index
    %c0_5 = arith.constant 0 : index
    %7 = vector.load %arg5[%c8, %c0_5] : memref<36x768xf32, #tpu.memory_space<vmem>>, vector<4x768xf32>
    tpu.vector_store %arg5[%c8, %c0_5], %6 {strides = array<i32>} : memref<36x768xf32, #tpu.memory_space<vmem>>, vector<4x768xf32>,
    %8 = vector.extract_strided_slice %1 {offsets = [0, 18], sizes = [4, 768], strides = [1, 1]} : vector<4x896xf32> to vector<4x768xf32>
    %c12 = arith.constant 12 : index
    %c0_6 = arith.constant 0 : index
    %9 = vector.load %arg5[%c12, %c0_6] : memref<36x768xf32, #tpu.memory_space<vmem>>, vector<4x768xf32>
    tpu.vector_store %arg5[%c12, %c0_6], %8 {strides = array<i32>} : memref<36x768xf32, #tpu.memory_space<vmem>>, vector<4x768xf32>,
    %10 = vector.extract_strided_slice %1 {offsets = [0, 19], sizes = [4, 768], strides = [1, 1]} : vector<4x896xf32> to vector<4x768xf32>
    %c16 = arith.constant 16 : index
    %c0_7 = arith.constant 0 : index
    %11 = vector.load %arg5[%c16, %c0_7] : memref<36x768xf32, #tpu.memory_space<vmem>>, vector<4x768xf32>
    tpu.vector_store %arg5[%c16, %c0_7], %10 {strides = array<i32>} : memref<36x768xf32, #tpu.memory_space<vmem>>, vector<4x768xf32>,
    %12 = vector.extract_strided_slice %1 {offsets = [0, 20], sizes = [4, 768], strides = [1, 1]} : vector<4x896xf32> to vector<4x768xf32>
    %c20 = arith.constant 20 : index
    %c0_8 = arith.constant 0 : index
    %13 = vector.load %arg5[%c20, %c0_8] : memref<36x768xf32, #tpu.memory_space<vmem>>, vector<4x768xf32>
    tpu.vector_store %arg5[%c20, %c0_8], %12 {strides = array<i32>} : memref<36x768xf32, #tpu.memory_space<vmem>>, vector<4x768xf32>,
    %14 = vector.extract_strided_slice %1 {offsets = [0, 36], sizes = [4, 768], strides = [1, 1]} : vector<4x896xf32> to vector<4x768xf32>
    %c24 = arith.constant 24 : index
    %c0_9 = arith.constant 0 : index
    %15 = vector.load %arg5[%c24, %c0_9] : memref<36x768xf32, #tpu.memory_space<vmem>>, vector<4x768xf32>
    tpu.vector_store %arg5[%c24, %c0_9], %14 {strides = array<i32>} : memref<36x768xf32, #tpu.memory_space<vmem>>, vector<4x768xf32>,
    %16 = vector.extract_strided_slice %1 {offsets = [0, 37], sizes = [4, 768], strides = [1, 1]} : vector<4x896xf32> to vector<4x768xf32>
    %c28 = arith.constant 28 : index
    %c0_10 = arith.constant 0 : index
    %17 = vector.load %arg5[%c28, %c0_10] : memref<36x768xf32, #tpu.memory_space<vmem>>, vector<4x768xf32>
    tpu.vector_store %arg5[%c28, %c0_10], %16 {strides = array<i32>} : memref<36x768xf32, #tpu.memory_space<vmem>>, vector<4x768xf32>,
    %18 = vector.extract_strided_slice %1 {offsets = [0, 38], sizes = [4, 768], strides = [1, 1]} : vector<4x896xf32> to vector<4x768xf32>
    %c32 = arith.constant 32 : index
    %c0_11 = arith.constant 0 : index
    %19 = vector.load %arg5[%c32, %c0_11] : memref<36x768xf32, #tpu.memory_space<vmem>>, vector<4x768xf32>
    tpu.vector_store %arg5[%c32, %c0_11], %18 {strides = array<i32>} : memref<36x768xf32, #tpu.memory_space<vmem>>, vector<4x768xf32>,
    %c0_12 = arith.constant 0 : index
    %c0_13 = arith.constant 0 : index
    %20 = vector.load %arg2[%c0_12, %c0_13] : memref<8x36xf32, #tpu.memory_space<vmem>>, vector<8x36xf32>
    %c0_14 = arith.constant 0 : index
    %c0_15 = arith.constant 0 : index
    %21 = vector.load %arg5[%c0_14, %c0_15] : memref<36x768xf32, #tpu.memory_space<vmem>>, vector<36x768xf32>
    %cst = arith.constant dense<0.000000e+00> : vector<8x768xf32>
    %22 = tpu.matmul %20, %21, %cst {dimension_numbers = #tpu.dot_dimension_numbers<[1], [0], [0], [1], [0, 0, 1, 1], [], []>} : vector<8x36xf32>, vector<36x768xf32>, vector<8x768xf32> -> vector<8x768xf32>
    %c0_16 = arith.constant 0 : index
    %c0_17 = arith.constant 0 : index
    %23 = vector.load %arg3[%c0_16, %c0_17] : memref<8x1xf32, #tpu.memory_space<vmem>>, vector<8x1xf32>
    %24 = vector.broadcast %23 : vector<8x1xf32> to vector<8x768xf32>
    %25 = arith.addf %22, %24 : vector<8x768xf32>
    %c0_18 = arith.constant 0 : index
    %c0_19 = arith.constant 0 : index
    %c0_20 = arith.constant 0 : index
    %26 = vector.load %arg4[%c0_18, %c0_19, %c0_20] : memref<1x8x768xf32, #tpu.memory_space<vmem>>, vector<1x8x768xf32>
    %27 = vector.shape_cast %26 : vector<1x8x768xf32> to vector<8x768xf32>
    %28 = vector.shape_cast %25 : vector<8x768xf32> to vector<1x8x768xf32>
    tpu.vector_store %arg4[%c0_18, %c0_19, %c0_20], %28 {strides = array<i32>} : memref<1x8x768xf32, #tpu.memory_space<vmem>>, vector<1x8x768xf32>,
    return
  }
  func.func @transform_0(%arg0: i32) -> (i32, i32, i32) {
    %c0_i32 = arith.constant 0 : i32
    %c0_i32_0 = arith.constant 0 : i32
    %c0_i32_1 = arith.constant 0 : i32
    return %arg0, %c0_i32, %c0_i32_0 : i32, i32, i32
  }
  func.func @transform_1(%arg0: i32) -> (i32, i32) {
    %c0_i32 = arith.constant 0 : i32
    %c0_i32_0 = arith.constant 0 : i32
    %c0_i32_1 = arith.constant 0 : i32
    return %c0_i32, %c0_i32_0 : i32, i32
  }
  func.func @transform_2(%arg0: i32) -> (i32, i32) {
    %c0_i32 = arith.constant 0 : i32
    %c0_i32_0 = arith.constant 0 : i32
    %c0_i32_1 = arith.constant 0 : i32
    return %c0_i32, %c0_i32_0 : i32, i32
  }
  func.func @transform_3(%arg0: i32) -> (i32, i32, i32) {
    %c0_i32 = arith.constant 0 : i32
    %c0_i32_0 = arith.constant 0 : i32
    %c0_i32_1 = arith.constant 0 : i32
    return %arg0, %c0_i32, %c0_i32_0 : i32, i32, i32
  }
}

</mosaic_0001>

<llo_original>
// kernel: inconv_forward.1
$region0: #{inconv_forward.1}
  #allocation0 [shape = 'u32[]', space=smem, size = 0x4, offset = 0x4, fixed_abs, tag = 'smem constant byte address 0x4 - core index']
  #allocation1 [shape = 'u32[144,128]{1,0:T(1,128)}', space=vmem, size = 0x12000, scoped, tag = 'internal scratch']
  #allocation2 [shape = 'f32[36,768]{1,0:T(8,128)}', space=vmem, size = 0x1e000, scoped, tag = 'scratch operand']
  %s0 = inlined_call_operand.vmem [shape: f32[1,4,896], index: 0, kind: input, shape index: {}]
  %s1 = inlined_call_operand.vmem [shape: f32[8,36], index: 1, kind: input, shape index: {}]
  %s2 = inlined_call_operand.vmem [shape: f32[8,1], index: 2, kind: input, shape index: {}]
  %s3 = inlined_call_operand.vmem [shape: f32[1,8,768], index: 3, kind: output, shape index: {}]
  %s4 = sld [smem:[#allocation0]]
  $region22: #{inconv_forward.1} parent=0
    _
  %s6 = ssub.s32 1, %s4
  %s7 = scalar_select 0, %s6, %s4
  // Predicated region
  $region2: #{inconv_forward.1} parent=0 // pred_check
    _
  $region3: #{inconv_forward.1} parent=0 // pred_check_branch
    %9 = sbr.rel (0) target = $region5
  $region4: #{inconv_forward.1} parent=0 // pred_region
    _
  $region5: #{inconv_forward.1} parent=0 // pred_fallthru
    _
  // Predicated region
  $region6: #{inconv_forward.1} parent=0 // pred_check
    _
  $region7: #{inconv_forward.1} parent=0 // pred_check_branch
    %11 = sbr.rel (0) target = $region9
  $region8: #{inconv_forward.1} parent=0 // pred_region
    _
  $region9: #{inconv_forward.1} parent=0 // pred_fallthru
    _
  // Predicated region
  $region10: #{inconv_forward.1} parent=0 // pred_check
    _
  $region11: #{inconv_forward.1} parent=0 // pred_check_branch
    %13 = sbr.rel (0) target = $region13
  $region12: #{inconv_forward.1} parent=0 // pred_region
    _
  $region13: #{inconv_forward.1} parent=0 // pred_fallthru
    _
  %v14 = vld [vmem:[%s0] sm:$0xff]
  %v15 = vld [vmem:[%s0 + $0x8] sm:$0xff]
  %v16 = vld [vmem:[%s0 + $0x10] sm:$0xff]
  %v17 = vld [vmem:[%s0 + $0x18] sm:$0xf]
  %v21 = vcombine.high %v14, %v14
  %v22 = vcombine.high %v15, %v15
  %v23 = vcombine.high %v16, %v16
  %27 = vst [vmem:[#allocation2] sm:$0xf] %v14
  %28 = vst [vmem:[#allocation2 + $0x8] sm:$0xf] %v21
  %29 = vst [vmem:[#allocation2 + $0x10] sm:$0xf] %v15
  %30 = vst [vmem:[#allocation2 + $0x18] sm:$0xf] %v22
  %31 = vst [vmem:[#allocation2 + $0x20] sm:$0xf] %v16
  %32 = vst [vmem:[#allocation2 + $0x28] sm:$0xf] %v23
  %v34 = vcombine.low %v14, %v14
  %v35 = vcombine.low %v15, %v15
  %v36 = vcombine.low %v16, %v16
  %v37 = vcombine.low %v17, %v17
  %38 = vrot.lane.b32.xlu0 %v34, 127
  %v39 = vpop.permute.xlu0 %38
  %40 = vrot.lane.b32.xlu0 %v14, 127
  %v41 = vpop.permute.xlu0 %40
  %42 = vrot.lane.b32.xlu0 %v35, 127
  %v43 = vpop.permute.xlu0 %42
  %44 = vrot.lane.b32.xlu0 %v15, 127
  %v45 = vpop.permute.xlu0 %44
  %46 = vrot.lane.b32.xlu0 %v36, 127
  %v47 = vpop.permute.xlu0 %46
  %48 = vrot.lane.b32.xlu0 %v16, 127
  %v49 = vpop.permute.xlu0 %48
  %50 = vrot.lane.b32.xlu0 %v37, 127
  %v51 = vpop.permute.xlu0 %50
  %vm52 = vcmask 1039360
  %v53 = vsel %vm52, %v39, %v41
  %v54 = vsel %vm52, %v41, %v43
  %v55 = vsel %vm52, %v43, %v45
  %v56 = vsel %vm52, %v45, %v47
  %v57 = vsel %vm52, %v47, %v49
  %v58 = vsel %vm52, %v49, %v51
  %65 = vst [vmem:[#allocation2] sm:$0xf0] %v53
  %66 = vst [vmem:[#allocation2 + $0x8] sm:$0xf0] %v54
  %67 = vst [vmem:[#allocation2 + $0x10] sm:$0xf0] %v55
  %68 = vst [vmem:[#allocation2 + $0x18] sm:$0xf0] %v56
  %69 = vst [vmem:[#allocation2 + $0x20] sm:$0xf0] %v57
  %70 = vst [vmem:[#allocation2 + $0x28] sm:$0xf0] %v58
  %71 = vrot.lane.b32.xlu0 %v14, 126
  %v72 = vpop.permute.xlu0 %71
  %73 = vrot.lane.b32.xlu0 %v21, 126
  %v74 = vpop.permute.xlu0 %73
  %75 = vrot.lane.b32.xlu0 %v15, 126
  %v76 = vpop.permute.xlu0 %75
  %77 = vrot.lane.b32.xlu0 %v22, 126
  %v78 = vpop.permute.xlu0 %77
  %79 = vrot.lane.b32.xlu0 %v16, 126
  %v80 = vpop.permute.xlu0 %79
  %81 = vrot.lane.b32.xlu0 %v23, 126
  %v82 = vpop.permute.xlu0 %81
  %83 = vrot.lane.b32.xlu0 %v17, 126
  %v84 = vpop.permute.xlu0 %83
  %vm85 = vcmask 1031168
  %v86 = vsel %vm85, %v72, %v74
  %v87 = vsel %vm85, %v74, %v76
  %v88 = vsel %vm85, %v76, %v78
  %v89 = vsel %vm85, %v78, %v80
  %v90 = vsel %vm85, %v80, %v82
  %v91 = vsel %vm85, %v82, %v84
  %98 = vst [vmem:[#allocation2 + $0x30] sm:$0xf] %v86
  %99 = vst [vmem:[#allocation2 + $0x38] sm:$0xf] %v87
  %100 = vst [vmem:[#allocation2 + $0x40] sm:$0xf] %v88
  %101 = vst [vmem:[#allocation2 + $0x48] sm:$0xf] %v89
  %102 = vst [vmem:[#allocation2 + $0x50] sm:$0xf] %v90
  %103 = vst [vmem:[#allocation2 + $0x58] sm:$0xf] %v91
  %104 = vrot.lane.b32.xlu0 %v34, 110
  %v105 = vpop.permute.xlu0 %104
  %106 = vrot.lane.b32.xlu0 %v14, 110
  %v107 = vpop.permute.xlu0 %106
  %108 = vrot.lane.b32.xlu0 %v35, 110
  %v109 = vpop.permute.xlu0 %108
  %110 = vrot.lane.b32.xlu0 %v15, 110
  %v111 = vpop.permute.xlu0 %110
  %112 = vrot.lane.b32.xlu0 %v36, 110
  %v113 = vpop.permute.xlu0 %112
  %114 = vrot.lane.b32.xlu0 %v16, 110
  %v115 = vpop.permute.xlu0 %114
  %116 = vrot.lane.b32.xlu0 %v37, 110
  %v117 = vpop.permute.xlu0 %116
  %vm118 = vcmask 900096
  %v119 = vsel %vm118, %v105, %v107
  %v120 = vsel %vm118, %v107, %v109
  %v121 = vsel %vm118, %v109, %v111
  %v122 = vsel %vm118, %v111, %v113
  %v123 = vsel %vm118, %v113, %v115
  %v124 = vsel %vm118, %v115, %v117
  %131 = vst [vmem:[#allocation2 + $0x30] sm:$0xf0] %v119
  %132 = vst [vmem:[#allocation2 + $0x38] sm:$0xf0] %v120
  %133 = vst [vmem:[#allocation2 + $0x40] sm:$0xf0] %v121
  %134 = vst [vmem:[#allocation2 + $0x48] sm:$0xf0] %v122
  %135 = vst [vmem:[#allocation2 + $0x50] sm:$0xf0] %v123
  %136 = vst [vmem:[#allocation2 + $0x58] sm:$0xf0] %v124
  %137 = vrot.lane.b32.xlu0 %v14, 109
  %v138 = vpop.permute.xlu0 %137
  %139 = vrot.lane.b32.xlu0 %v21, 109
  %v140 = vpop.permute.xlu0 %139
  %141 = vrot.lane.b32.xlu0 %v15, 109
  %v142 = vpop.permute.xlu0 %141
  %143 = vrot.lane.b32.xlu0 %v22, 109
  %v144 = vpop.permute.xlu0 %143
  %145 = vrot.lane.b32.xlu0 %v16, 109
  %v146 = vpop.permute.xlu0 %145
  %147 = vrot.lane.b32.xlu0 %v23, 109
  %v148 = vpop.permute.xlu0 %147
  %149 = vrot.lane.b32.xlu0 %v17, 109
  %v150 = vpop.permute.xlu0 %149
  %vm151 = vcmask 891904
  %v152 = vsel %vm151, %v138, %v140
  %v153 = vsel %vm151, %v140, %v142
  %v154 = vsel %vm151, %v142, %v144
  %v155 = vsel %vm151, %v144, %v146
  %v156 = vsel %vm151, %v146, %v148
  %v157 = vsel %vm151, %v148, %v150
  %164 = vst [vmem:[#allocation2 + $0x60] sm:$0xf] %v152
  %165 = vst [vmem:[#allocation2 + $0x68] sm:$0xf] %v153
  %166 = vst [vmem:[#allocation2 + $0x70] sm:$0xf] %v154
  %167 = vst [vmem:[#allocation2 + $0x78] sm:$0xf] %v155
  %168 = vst [vmem:[#allocation2 + $0x80] sm:$0xf] %v156
  %169 = vst [vmem:[#allocation2 + $0x88] sm:$0xf] %v157
  %170 = vrot.lane.b32.xlu0 %v34, 108
  %v171 = vpop.permute.xlu0 %170
  %172 = vrot.lane.b32.xlu0 %v14, 108
  %v173 = vpop.permute.xlu0 %172
  %174 = vrot.lane.b32.xlu0 %v35, 108
  %v175 = vpop.permute.xlu0 %174
  %176 = vrot.lane.b32.xlu0 %v15, 108
  %v177 = vpop.permute.xlu0 %176
  %178 = vrot.lane.b32.xlu0 %v36, 108
  %v179 = vpop.permute.xlu0 %178
  %180 = vrot.lane.b32.xlu0 %v16, 108
  %v181 = vpop.permute.xlu0 %180
  %182 = vrot.lane.b32.xlu0 %v37, 108
  %v183 = vpop.permute.xlu0 %182
  %vm184 = vcmask 883712
  %v185 = vsel %vm184, %v171, %v173
  %v186 = vsel %vm184, %v173, %v175
  %v187 = vsel %vm184, %v175, %v177
  %v188 = vsel %vm184, %v177, %v179
  %v189 = vsel %vm184, %v179, %v181
  %v190 = vsel %vm184, %v181, %v183
  %197 = vst [vmem:[#allocation2 + $0x60] sm:$0xf0] %v185
  %198 = vst [vmem:[#allocation2 + $0x68] sm:$0xf0] %v186
  %199 = vst [vmem:[#allocation2 + $0x70] sm:$0xf0] %v187
  %200 = vst [vmem:[#allocation2 + $0x78] sm:$0xf0] %v188
  %201 = vst [vmem:[#allocation2 + $0x80] sm:$0xf0] %v189
  %202 = vst [vmem:[#allocation2 + $0x88] sm:$0xf0] %v190
  %203 = vrot.lane.b32.xlu0 %v14, 92
  %v204 = vpop.permute.xlu0 %203
  %205 = vrot.lane.b32.xlu0 %v21, 92
  %v206 = vpop.permute.xlu0 %205
  %207 = vrot.lane.b32.xlu0 %v15, 92
  %v208 = vpop.permute.xlu0 %207
  %209 = vrot.lane.b32.xlu0 %v22, 92
  %v210 = vpop.permute.xlu0 %209
  %211 = vrot.lane.b32.xlu0 %v16, 92
  %v212 = vpop.permute.xlu0 %211
  %213 = vrot.lane.b32.xlu0 %v23, 92
  %v214 = vpop.permute.xlu0 %213
  %215 = vrot.lane.b32.xlu0 %v17, 92
  %v216 = vpop.permute.xlu0 %215
  %vm217 = vcmask 752640
  %v218 = vsel %vm217, %v204, %v206
  %v219 = vsel %vm217, %v206, %v208
  %v220 = vsel %vm217, %v208, %v210
  %v221 = vsel %vm217, %v210, %v212
  %v222 = vsel %vm217, %v212, %v214
  %v223 = vsel %vm217, %v214, %v216
  %230 = vst [vmem:[#allocation2 + $0x90] sm:$0xf] %v218
  %231 = vst [vmem:[#allocation2 + $0x98] sm:$0xf] %v219
  %232 = vst [vmem:[#allocation2 + $0xa0] sm:$0xf] %v220
  %233 = vst [vmem:[#allocation2 + $0xa8] sm:$0xf] %v221
  %234 = vst [vmem:[#allocation2 + $0xb0] sm:$0xf] %v222
  %235 = vst [vmem:[#allocation2 + $0xb8] sm:$0xf] %v223
  %236 = vrot.lane.b32.xlu0 %v34, 91
  %v237 = vpop.permute.xlu0 %236
  %238 = vrot.lane.b32.xlu0 %v14, 91
  %v239 = vpop.permute.xlu0 %238
  %240 = vrot.lane.b32.xlu0 %v35, 91
  %v241 = vpop.permute.xlu0 %240
  %242 = vrot.lane.b32.xlu0 %v15, 91
  %v243 = vpop.permute.xlu0 %242
  %244 = vrot.lane.b32.xlu0 %v36, 91
  %v245 = vpop.permute.xlu0 %244
  %246 = vrot.lane.b32.xlu0 %v16, 91
  %v247 = vpop.permute.xlu0 %246
  %248 = vrot.lane.b32.xlu0 %v37, 91
  %v249 = vpop.permute.xlu0 %248
  %vm250 = vcmask 744448
  %v251 = vsel %vm250, %v237, %v239
  %v252 = vsel %vm250, %v239, %v241
  %v253 = vsel %vm250, %v241, %v243
  %v254 = vsel %vm250, %v243, %v245
  %v255 = vsel %vm250, %v245, %v247
  %v256 = vsel %vm250, %v247, %v249
  %263 = vst [vmem:[#allocation2 + $0x90] sm:$0xf0] %v251
  %264 = vst [vmem:[#allocation2 + $0x98] sm:$0xf0] %v252
  %265 = vst [vmem:[#allocation2 + $0xa0] sm:$0xf0] %v253
  %266 = vst [vmem:[#allocation2 + $0xa8] sm:$0xf0] %v254
  %267 = vst [vmem:[#allocation2 + $0xb0] sm:$0xf0] %v255
  %268 = vst [vmem:[#allocation2 + $0xb8] sm:$0xf0] %v256
  %269 = vrot.lane.b32.xlu0 %v14, 90
  %v270 = vpop.permute.xlu0 %269
  %271 = vrot.lane.b32.xlu0 %v21, 90
  %v272 = vpop.permute.xlu0 %271
  %273 = vrot.lane.b32.xlu0 %v15, 90
  %v274 = vpop.permute.xlu0 %273
  %275 = vrot.lane.b32.xlu0 %v22, 90
  %v276 = vpop.permute.xlu0 %275
  %277 = vrot.lane.b32.xlu0 %v16, 90
  %v278 = vpop.permute.xlu0 %277
  %279 = vrot.lane.b32.xlu0 %v23, 90
  %v280 = vpop.permute.xlu0 %279
  %281 = vrot.lane.b32.xlu0 %v17, 90
  %v282 = vpop.permute.xlu0 %281
  %vm283 = vcmask 736256
  %v284 = vsel %vm283, %v270, %v272
  %v285 = vsel %vm283, %v272, %v274
  %v286 = vsel %vm283, %v274, %v276
  %v287 = vsel %vm283, %v276, %v278
  %v288 = vsel %vm283, %v278, %v280
  %v289 = vsel %vm283, %v280, %v282
  %296 = vst [vmem:[#allocation2 + $0xc0] sm:$0xf] %v284
  %297 = vst [vmem:[#allocation2 + $0xc8] sm:$0xf] %v285
  %298 = vst [vmem:[#allocation2 + $0xd0] sm:$0xf] %v286
  %299 = vst [vmem:[#allocation2 + $0xd8] sm:$0xf] %v287
  %300 = vst [vmem:[#allocation2 + $0xe0] sm:$0xf] %v288
  %301 = vst [vmem:[#allocation2 + $0xe8] sm:$0xf] %v289
  %v302 = vld [vmem:[%s1] sm:$0xff]
  %v303 = vld [vmem:[#allocation2] sm:$0xff]
  %v304 = vld [vmem:[#allocation2 + $0x8] sm:$0xff]
  %v305 = vld [vmem:[#allocation2 + $0x10] sm:$0xff]
  %v306 = vld [vmem:[#allocation2 + $0x18] sm:$0xff]
  %v307 = vld [vmem:[#allocation2 + $0x20] sm:$0xff]
  %v308 = vld [vmem:[#allocation2 + $0x28] sm:$0xff]
  %v309 = vld [vmem:[#allocation2 + $0x30] sm:$0xff]
  %v310 = vld [vmem:[#allocation2 + $0x38] sm:$0xff]
  %v311 = vld [vmem:[#allocation2 + $0x40] sm:$0xff]
  %v312 = vld [vmem:[#allocation2 + $0x48] sm:$0xff]
  %v313 = vld [vmem:[#allocation2 + $0x50] sm:$0xff]
  %v314 = vld [vmem:[#allocation2 + $0x58] sm:$0xff]
  %v315 = vld [vmem:[#allocation2 + $0x60] sm:$0xff]
  %v316 = vld [vmem:[#allocation2 + $0x68] sm:$0xff]
  %v317 = vld [vmem:[#allocation2 + $0x70] sm:$0xff]
  %v318 = vld [vmem:[#allocation2 + $0x78] sm:$0xff]
  %v319 = vld [vmem:[#allocation2 + $0x80] sm:$0xff]
  %v320 = vld [vmem:[#allocation2 + $0x88] sm:$0xff]
  %v321 = vld [vmem:[#allocation2 + $0x90] sm:$0xff]
  %v322 = vld [vmem:[#allocation2 + $0x98] sm:$0xff]
  %v323 = vld [vmem:[#allocation2 + $0xa0] sm:$0xff]
  %v324 = vld [vmem:[#allocation2 + $0xa8] sm:$0xff]
  %v325 = vld [vmem:[#allocation2 + $0xb0] sm:$0xff]
  %v326 = vld [vmem:[#allocation2 + $0xb8] sm:$0xff]
  %v327 = vld [vmem:[#allocation2 + $0xc0] sm:$0xf]
  %v328 = vld [vmem:[#allocation2 + $0xc8] sm:$0xf]
  %v329 = vld [vmem:[#allocation2 + $0xd0] sm:$0xf]
  %v330 = vld [vmem:[#allocation2 + $0xd8] sm:$0xf]
  %v331 = vld [vmem:[#allocation2 + $0xe0] sm:$0xf]
  %v332 = vld [vmem:[#allocation2 + $0xe8] sm:$0xf]
  %v333 = vld [vmem:[%s2] sm:$0xff]
  %335 = vset.pattern.permute.xlu0 0
  %336 = vperm.xlu0 %335, %v333
  %v337 = vpop.permute.xlu0 %336
  %vm339 = vcmask 293888
  %v341 = vsel %vm339, %v302, 0
  %vm343 = vcmask 1043456
  %v345 = vsel %vm343, %v327, 0
  %v348 = vsel %vm343, %v328, 0
  %v351 = vsel %vm343, %v329, 0
  %v354 = vsel %vm343, %v330, 0
  %v357 = vsel %vm343, %v331, 0
  %v360 = vsel %vm343, %v332, 0
  %362 = vmatprep.subr.mxu0 0.0
  %363 = vmatpush1.msra.mxu0 0.0
  %364 = vmatprep.subr.mxu0 0.0
  %365 = vmatpush1.msra.mxu0 0.0
  %366 = vmatprep.subr.mxu0 0.0
  %367 = vmatpush1.msra.mxu0 0.0
  %368 = vmatprep.subr.mxu0 0.0
  %369 = vmatpush1.msra.mxu0 0.0
  %370 = vmatprep.subr.mxu0 0.0
  %371 = vmatpush1.msra.mxu0 0.0
  %372 = vmatprep.subr.mxu0 0.0
  %373 = vmatpush1.msra.mxu0 0.0
  %374 = vmatprep.subr.mxu0 0.0
  %375 = vmatpush1.msra.mxu0 0.0
  %376 = vmatprep.subr.mxu0 0.0
  %377 = vmatpush1.msra.mxu0 0.0
  %378 = vmatprep.subr.mxu0 0.0
  %379 = vmatpush1.msra.mxu0 0.0
  %380 = vmatprep.subr.mxu0 0.0
  %381 = vmatpush1.msra.mxu0 0.0
  %382 = vmatprep.subr.mxu0 0.0
  %383 = vmatpush1.msra.mxu0 0.0
  %384 = vmatprep.subr.mxu0 %v348
  %385 = vmatpush1.msra.mxu0 %v345
  %386 = vmatprep.subr.mxu0 %v322
  %387 = vmatpush1.msra.mxu0 %v321
  %388 = vmatprep.subr.mxu0 %v316
  %389 = vmatpush1.msra.mxu0 %v315
  %390 = vmatprep.subr.mxu0 %v310
  %391 = vmatpush1.msra.mxu0 %v309
  %392 = vmatprep.subr.mxu0 %v304
  %393 = vmatpush1.msra.mxu0 %v303
  %394 = vmatprep.subr.mxu0 0.0
  %395 = vmatpush2.msra.mxu0 0.0
  %396 = vmatprep.subr.mxu0 0.0
  %397 = vmatpush2.msra.mxu0 0.0
  %398 = vmatprep.subr.mxu0 0.0
  %399 = vmatpush2.msra.mxu0 0.0
  %400 = vmatprep.subr.mxu0 0.0
  %401 = vmatpush2.msra.mxu0 0.0
  %402 = vmatprep.subr.mxu0 0.0
  %403 = vmatpush2.msra.mxu0 0.0
  %404 = vmatprep.subr.mxu0 0.0
  %405 = vmatpush2.msra.mxu0 0.0
  %406 = vmatprep.subr.mxu0 0.0
  %407 = vmatpush2.msra.mxu0 0.0
  %408 = vmatprep.subr.mxu0 0.0
  %409 = vmatpush2.msra.mxu0 0.0
  %410 = vmatprep.subr.mxu0 0.0
  %411 = vmatpush2.msra.mxu0 0.0
  %412 = vmatprep.subr.mxu0 0.0
  %413 = vmatpush2.msra.mxu0 0.0
  %414 = vmatprep.subr.mxu0 0.0
  %415 = vmatpush2.msra.mxu0 0.0
  %416 = vmatprep.subr.mxu0 0.0
  %417 = vmatpush2.msra.mxu0 0.0
  %418 = vmatprep.subr.mxu0 0.0
  %419 = vmatpush2.msra.mxu0 0.0
  %420 = vmatprep.subr.mxu0 0.0
  %421 = vmatpush2.msra.mxu0 0.0
  %422 = vmatprep.subr.mxu0 0.0
  %423 = vmatpush2.msra.mxu0 0.0
  %424 = vmatprep.subr.mxu0 0.0
  %425 = vmatpush2.msra.mxu0 0.0
  %426 = vmatprep.mubr.f32.mxu0 0.0
  %427 = vmatmul.mubr.f32.gmra.mxu0 %v341
  %v428 = vpop.f32.mrf.mxu0
  %v429 = vadd.f32 %v337, %v428
  %v430 = vpop.f32.mrf.mxu0
  %v431 = vadd.f32 %v337, %v430
  %432 = vdwg.mxu0
  %433 = vmatprep.subr.mxu0 0.0
  %434 = vmatpush1.msra.mxu0 0.0
  %435 = vmatprep.subr.mxu0 0.0
  %436 = vmatpush1.msra.mxu0 0.0
  %437 = vmatprep.subr.mxu0 0.0
  %438 = vmatpush1.msra.mxu0 0.0
  %439 = vmatprep.subr.mxu0 0.0
  %440 = vmatpush1.msra.mxu0 0.0
  %441 = vmatprep.subr.mxu0 0.0
  %442 = vmatpush1.msra.mxu0 0.0
  %443 = vmatprep.subr.mxu0 0.0
  %444 = vmatpush1.msra.mxu0 0.0
  %445 = vmatprep.subr.mxu0 0.0
  %446 = vmatpush1.msra.mxu0 0.0
  %447 = vmatprep.subr.mxu0 0.0
  %448 = vmatpush1.msra.mxu0 0.0
  %449 = vmatprep.subr.mxu0 0.0
  %450 = vmatpush1.msra.mxu0 0.0
  %451 = vmatprep.subr.mxu0 0.0
  %452 = vmatpush1.msra.mxu0 0.0
  %453 = vmatprep.subr.mxu0 0.0
  %454 = vmatpush1.msra.mxu0 0.0
  %455 = vmatprep.subr.mxu0 %v354
  %456 = vmatpush1.msra.mxu0 %v351
  %457 = vmatprep.subr.mxu0 %v324
  %458 = vmatpush1.msra.mxu0 %v323
  %459 = vmatprep.subr.mxu0 %v318
  %460 = vmatpush1.msra.mxu0 %v317
  %461 = vmatprep.subr.mxu0 %v312
  %462 = vmatpush1.msra.mxu0 %v311
  %463 = vmatprep.subr.mxu0 %v306
  %464 = vmatpush1.msra.mxu0 %v305
  %465 = vmatprep.subr.mxu0 0.0
  %466 = vmatpush2.msra.mxu0 0.0
  %467 = vmatprep.subr.mxu0 0.0
  %468 = vmatpush2.msra.mxu0 0.0
  %469 = vmatprep.subr.mxu0 0.0
  %470 = vmatpush2.msra.mxu0 0.0
  %471 = vmatprep.subr.mxu0 0.0
  %472 = vmatpush2.msra.mxu0 0.0
  %473 = vmatprep.subr.mxu0 0.0
  %474 = vmatpush2.msra.mxu0 0.0
  %475 = vmatprep.subr.mxu0 0.0
  %476 = vmatpush2.msra.mxu0 0.0
  %477 = vmatprep.subr.mxu0 0.0
  %478 = vmatpush2.msra.mxu0 0.0
  %479 = vmatprep.subr.mxu0 0.0
  %480 = vmatpush2.msra.mxu0 0.0
  %481 = vmatprep.subr.mxu0 0.0
  %482 = vmatpush2.msra.mxu0 0.0
  %483 = vmatprep.subr.mxu0 0.0
  %484 = vmatpush2.msra.mxu0 0.0
  %485 = vmatprep.subr.mxu0 0.0
  %486 = vmatpush2.msra.mxu0 0.0
  %487 = vmatprep.subr.mxu0 0.0
  %488 = vmatpush2.msra.mxu0 0.0
  %489 = vmatprep.subr.mxu0 0.0
  %490 = vmatpush2.msra.mxu0 0.0
  %491 = vmatprep.subr.mxu0 0.0
  %492 = vmatpush2.msra.mxu0 0.0
  %493 = vmatprep.subr.mxu0 0.0
  %494 = vmatpush2.msra.mxu0 0.0
  %495 = vmatprep.subr.mxu0 0.0
  %496 = vmatpush2.msra.mxu0 0.0
  %497 = vmatprep.mubr.f32.mxu0 0.0
  %498 = vmatmul.mubr.f32.gmra.mxu0 %v341
  %v499 = vpop.f32.mrf.mxu0
  %v500 = vadd.f32 %v337, %v499
  %v501 = vpop.f32.mrf.mxu0
  %v502 = vadd.f32 %v337, %v501
  %503 = vdwg.mxu0
  %504 = vmatprep.subr.mxu0 0.0
  %505 = vmatpush1.msra.mxu0 0.0
  %506 = vmatprep.subr.mxu0 0.0
  %507 = vmatpush1.msra.mxu0 0.0
  %508 = vmatprep.subr.mxu0 0.0
  %509 = vmatpush1.msra.mxu0 0.0
  %510 = vmatprep.subr.mxu0 0.0
  %511 = vmatpush1.msra.mxu0 0.0
  %512 = vmatprep.subr.mxu0 0.0
  %513 = vmatpush1.msra.mxu0 0.0
  %514 = vmatprep.subr.mxu0 0.0
  %515 = vmatpush1.msra.mxu0 0.0
  %516 = vmatprep.subr.mxu0 0.0
  %517 = vmatpush1.msra.mxu0 0.0
  %518 = vmatprep.subr.mxu0 0.0
  %519 = vmatpush1.msra.mxu0 0.0
  %520 = vmatprep.subr.mxu0 0.0
  %521 = vmatpush1.msra.mxu0 0.0
  %522 = vmatprep.subr.mxu0 0.0
  %523 = vmatpush1.msra.mxu0 0.0
  %524 = vmatprep.subr.mxu0 0.0
  %525 = vmatpush1.msra.mxu0 0.0
  %526 = vmatprep.subr.mxu0 %v360
  %527 = vmatpush1.msra.mxu0 %v357
  %528 = vmatprep.subr.mxu0 %v326
  %529 = vmatpush1.msra.mxu0 %v325
  %530 = vmatprep.subr.mxu0 %v320
  %531 = vmatpush1.msra.mxu0 %v319
  %532 = vmatprep.subr.mxu0 %v314
  %533 = vmatpush1.msra.mxu0 %v313
  %534 = vmatprep.subr.mxu0 %v308
  %535 = vmatpush1.msra.mxu0 %v307
  %536 = vmatprep.subr.mxu0 0.0
  %537 = vmatpush2.msra.mxu0 0.0
  %538 = vmatprep.subr.mxu0 0.0
  %539 = vmatpush2.msra.mxu0 0.0
  %540 = vmatprep.subr.mxu0 0.0
  %541 = vmatpush2.msra.mxu0 0.0
  %542 = vmatprep.subr.mxu0 0.0
  %543 = vmatpush2.msra.mxu0 0.0
  %544 = vmatprep.subr.mxu0 0.0
  %545 = vmatpush2.msra.mxu0 0.0
  %546 = vmatprep.subr.mxu0 0.0
  %547 = vmatpush2.msra.mxu0 0.0
  %548 = vmatprep.subr.mxu0 0.0
  %549 = vmatpush2.msra.mxu0 0.0
  %550 = vmatprep.subr.mxu0 0.0
  %551 = vmatpush2.msra.mxu0 0.0
  %552 = vmatprep.subr.mxu0 0.0
  %553 = vmatpush2.msra.mxu0 0.0
  %554 = vmatprep.subr.mxu0 0.0
  %555 = vmatpush2.msra.mxu0 0.0
  %556 = vmatprep.subr.mxu0 0.0
  %557 = vmatpush2.msra.mxu0 0.0
  %558 = vmatprep.subr.mxu0 0.0
  %559 = vmatpush2.msra.mxu0 0.0
  %560 = vmatprep.subr.mxu0 0.0
  %561 = vmatpush2.msra.mxu0 0.0
  %562 = vmatprep.subr.mxu0 0.0
  %563 = vmatpush2.msra.mxu0 0.0
  %564 = vmatprep.subr.mxu0 0.0
  %565 = vmatpush2.msra.mxu0 0.0
  %566 = vmatprep.subr.mxu0 0.0
  %567 = vmatpush2.msra.mxu0 0.0
  %568 = vmatprep.mubr.f32.mxu0 0.0
  %569 = vmatmul.mubr.f32.gmra.mxu0 %v341
  %v570 = vpop.f32.mrf.mxu0
  %v571 = vadd.f32 %v337, %v570
  %v572 = vpop.f32.mrf.mxu0
  %v573 = vadd.f32 %v337, %v572
  %574 = vdwg.mxu0
  %575 = vst [vmem:[%s3] sm:$0xff] %v429
  %576 = vst [vmem:[%s3 + $0x8] sm:$0xff] %v431
  %577 = vst [vmem:[%s3 + $0x10] sm:$0xff] %v500
  %578 = vst [vmem:[%s3 + $0x18] sm:$0xff] %v502
  %579 = vst [vmem:[%s3 + $0x20] sm:$0xff] %v571
  %580 = vst [vmem:[%s3 + $0x28] sm:$0xff] %v573
  // Predicated region
  $region14: #{inconv_forward.1} parent=0 // pred_check
    _
  $region15: #{inconv_forward.1} parent=0 // pred_check_branch
    %582 = sbr.rel (0) target = $region17
  $region16: #{inconv_forward.1} parent=0 // pred_region
    _
  $region17: #{inconv_forward.1} parent=0 // pred_fallthru
    _
  // Predicated region
  $region18: #{inconv_forward.1} parent=0 // pred_check
    _
  $region19: #{inconv_forward.1} parent=0 // pred_check_branch
    %584 = sbr.rel (0) target = $region21
  $region20: #{inconv_forward.1} parent=0 // pred_region
    _
  $region21: #{inconv_forward.1} parent=0 // pred_fallthru
    _

</llo_original>
